<compile_context>
chip_gen: v7x
topology: tpu7x:2x2x1
jax: 0.10.0
libtpu: 0.0.40
codegen_flags: <defaults>
</compile_context>

<pallas_src>
import jax
import jax.numpy as jnp
from jax.experimental import pallas as pl
from jax.experimental.pallas import tpu as pltpu


def _cdiv(a, b):
    return -(-a // b)


def _round_up(x, m):
    return _cdiv(x, m) * m


def signal_fc_kernel(x_ref, w1_ref, b1_ref, w2_ref, b2_ref, o_ref):
    # Transposed (batch-on-lanes) layout:
    #   x_ref  [4,  TB]   w1_ref [F1, 4]   b1_ref [F1, 1]
    #   w2_ref [C,  F1]   b2_ref [C,  1]   o_ref  [C,  TB]
    x = x_ref[...]                                   # [4, TB]
    w1 = w1_ref[...]                                 # [F1, 4]

    # Layer 1: K=4 contraction as 4 VPU broadcast multiply-adds (outer
    # products), skipping the MXU for this tiny contraction.  b1 is folded
    # into the first MAC to save one [F1, TB] add pass.
    acc = w1[:, 0:1] * x[0:1, :] + b1_ref[...]       # [F1, TB]
    for k in range(1, 4):                            # static unroll
        acc = acc + w1[:, k:k + 1] * x[k:k + 1, :]
    h = jnp.maximum(acc, 0.0)                        # ReLU, [F1, TB]

    # Layer 2 on the MXU: [C, F1] @ [F1, TB] -> [C, TB]
    logits = jnp.dot(w2_ref[...], h, preferred_element_type=jnp.float32)
    logits = logits + b2_ref[...]

    # Numerically stable softmax over the class (sublane) axis == torch dim=1.
    # Exact divide (NOT approx reciprocal) so rows sum to 1 to f32 precision.
    m = jnp.max(logits, axis=0, keepdims=True)       # [1, TB]
    e = jnp.exp(logits - m)
    denom = jnp.sum(e, axis=0, keepdims=True)        # [1, TB]
    o_ref[...] = (e * (1.0 / denom)).astype(o_ref.dtype)


def signal_fc_forward(x, w1, b1, w2, b2, *, tb=32768, transposed_output=False):
    """SignalFC forward.

    x:  [B, 4] float32
    w1: [n_feature1, 4], b1: [n_feature1]       (PyTorch nn.Linear layout)
    w2: [n_classes, n_feature1], b2: [n_classes]
    Returns softmax probabilities [B, n_classes] float32
    (or [n_classes, B] if transposed_output=True).
    """
    B = x.shape[0]
    F1 = w1.shape[0]
    C = w2.shape[0]

    # Cap the batch tile so ~3 live [F1, TB] f32 intermediates (acc/h/e) plus
    # the double-buffered x/out blocks stay far below v7x's 64 MiB VMEM.
    tb = min(tb, max(128, ((12 * 1024 * 1024) // (12 * F1)) // 128 * 128))

    # Tile selection: pad B to a 128-lane multiple, target `tb`-lane tiles,
    # and keep >= 2 grid steps for non-tiny batches (v7x megacore).
    B_128 = _round_up(B, 128)
    n_steps = _cdiv(B_128, tb)
    if n_steps == 1 and B_128 > 256:
        n_steps = 2
    TB = _round_up(_cdiv(B_128, n_steps), 128)
    B_pad = n_steps * TB

    # Lane-dense (batch-on-lanes) layout + column biases (layout plumbing
    # done by XLA outside the kernel; cost_estimate lets it schedule them).
    x_t = jnp.transpose(x)                           # [4, B]
    if B_pad != B:
        x_t = jnp.pad(x_t, ((0, 0), (0, B_pad - B)))
    b1c = b1.reshape(F1, 1)
    b2c = b2.reshape(C, 1)

    cost = pl.CostEstimate(
        flops=2 * B_pad * (4 * F1 + F1 * C) + 4 * B_pad * C,
        transcendentals=B_pad * C,
        bytes_accessed=(4 * 4 * B_pad + 4 * C * B_pad
                        + 4 * (F1 * 4 + F1 + C * F1 + C)),
    )

    out_t = pl.pallas_call(
        signal_fc_kernel,
        out_shape=jax.ShapeDtypeStruct((C, B_pad), jnp.float32),
        grid=(n_steps,),
        in_specs=[
            pl.BlockSpec((4, TB), lambda i: (0, i)),     # x tile, batch-tiled
            pl.BlockSpec((F1, 4), lambda i: (0, 0)),     # w1, VMEM-resident
            pl.BlockSpec((F1, 1), lambda i: (0, 0)),     # b1
            pl.BlockSpec((C, F1), lambda i: (0, 0)),     # w2
            pl.BlockSpec((C, 1), lambda i: (0, 0)),      # b2
        ],
        out_specs=pl.BlockSpec((C, TB), lambda i: (0, i)),
        compiler_params=pltpu.CompilerParams(
            dimension_semantics=("parallel",),           # megacore on v7x
            vmem_limit_bytes=48 * 1024 * 1024,           # big tiles, v7x-safe
        ),
        cost_estimate=cost,
    )(x_t, w1, b1c, w2, b2c)

    if transposed_output:
        return out_t[:, :B]                              # [C, B], lane-dense
    return jnp.transpose(out_t[:, :B])                   # [B, C]


def _reference(x, w1, b1, w2, b2):
    h = jnp.maximum(x @ w1.T + b1, 0.0)
    logits = h @ w2.T + b2
    return jax.nn.softmax(logits, axis=1)


def init_params(key, n_feature1, n_classes):
    # PyTorch nn.Linear-layout params: weight [out, in], bias [out].
    k1, k2, k3, k4 = jax.random.split(key, 4)
    w1 = jax.random.normal(k1, (n_feature1, 4), jnp.float32) * 0.1
    b1 = jax.random.normal(k2, (n_feature1,), jnp.float32) * 0.01
    w2 = jax.random.normal(k3, (n_classes, n_feature1), jnp.float32) * 0.1
    b2 = jax.random.normal(k4, (n_classes,), jnp.float32) * 0.01
    return w1, b1, w2, b2


if __name__ == "__main__":
    key = jax.random.PRNGKey(0)
    kx, kp, kx2 = jax.random.split(key, 3)

    n_feature1 = 32
    n_classes = 8
    w1, b1, w2, b2 = init_params(kp, n_feature1, n_classes)

    # Small batch: padded up to one 128-lane tile, grid=(1,).
    batch = 8
    x = jax.random.normal(kx, (batch, 4), jnp.float32)
    out = jax.block_until_ready(signal_fc_forward(x, w1, b1, w2, b2))
    ref = _reference(x, w1, b1, w2, b2)
    assert out.shape == (batch, n_classes)
    assert jnp.allclose(jnp.sum(out, axis=1), 1.0, atol=1e-3)
    assert jnp.allclose(out, ref, atol=2e-3)

    # Larger batch: exercises tiling + padding (>= 2 grid steps).
    batch2 = 4160
    x2 = jax.random.normal(kx2, (batch2, 4), jnp.float32)
    out2 = jax.block_until_ready(signal_fc_forward(x2, w1, b1, w2, b2))
    ref2 = _reference(x2, w1, b1, w2, b2)
    assert out2.shape == (batch2, n_classes)
    assert jnp.allclose(jnp.sum(out2, axis=1), 1.0, atol=1e-3)
    assert jnp.allclose(out2, ref2, atol=2e-3)

    print("KERNEL_OK")
</pallas_src>

<mosaic_0001>
module attributes {stable_mosaic.version = 11 : i64} {
  func.func @signal_fc_kernel(%arg0: i32, %arg1: memref<4x128xf32, #tpu.memory_space<vmem>>, %arg2: memref<32x4xf32, #tpu.memory_space<vmem>>, %arg3: memref<32x1xf32, #tpu.memory_space<vmem>>, %arg4: memref<8x32xf32, #tpu.memory_space<vmem>>, %arg5: memref<8x1xf32, #tpu.memory_space<vmem>>, %arg6: memref<8x128xf32, #tpu.memory_space<vmem>>) attributes {dimension_semantics = [#tpu.dimension_semantics<parallel>], iteration_bounds = array<i64: 1>, scalar_prefetch = 0 : i64, scratch_operands = 0 : i64, tpu.core_type = #tpu.core_type<tc>, window_params = [{transform_indices = @transform_0, window_bounds = array<i64: 4, 128>}, {pipeline_mode = #tpu.pipeline_mode<synchronous>, transform_indices = @transform_1, window_bounds = array<i64: 32, 4>}, {pipeline_mode = #tpu.pipeline_mode<synchronous>, transform_indices = @transform_2, window_bounds = array<i64: 32, 1>}, {pipeline_mode = #tpu.pipeline_mode<synchronous>, transform_indices = @transform_3, window_bounds = array<i64: 8, 32>}, {pipeline_mode = #tpu.pipeline_mode<synchronous>, transform_indices = @transform_4, window_bounds = array<i64: 8, 1>}, {transform_indices = @transform_5, window_bounds = array<i64: 8, 128>}]} {
    %c0 = arith.constant 0 : index
    %c0_0 = arith.constant 0 : index
    %0 = vector.load %arg1[%c0, %c0_0] : memref<4x128xf32, #tpu.memory_space<vmem>>, vector<4x128xf32>
    %c0_1 = arith.constant 0 : index
    %c0_2 = arith.constant 0 : index
    %1 = vector.load %arg2[%c0_1, %c0_2] : memref<32x4xf32, #tpu.memory_space<vmem>>, vector<32x4xf32>
    %2 = vector.extract_strided_slice %1 {offsets = [0, 0], sizes = [32, 1], strides = [1, 1]} : vector<32x4xf32> to vector<32x1xf32>
    %3 = vector.extract_strided_slice %0 {offsets = [0, 0], sizes = [1, 128], strides = [1, 1]} : vector<4x128xf32> to vector<1x128xf32>
    %4 = vector.broadcast %2 : vector<32x1xf32> to vector<32x128xf32>
    %5 = vector.broadcast %3 : vector<1x128xf32> to vector<32x128xf32>
    %6 = arith.mulf %4, %5 : vector<32x128xf32>
    %c0_3 = arith.constant 0 : index
    %c0_4 = arith.constant 0 : index
    %7 = vector.load %arg3[%c0_3, %c0_4] : memref<32x1xf32, #tpu.memory_space<vmem>>, vector<32x1xf32>
    %8 = vector.broadcast %7 : vector<32x1xf32> to vector<32x128xf32>
    %9 = arith.addf %6, %8 : vector<32x128xf32>
    %10 = vector.extract_strided_slice %1 {offsets = [0, 1], sizes = [32, 1], strides = [1, 1]} : vector<32x4xf32> to vector<32x1xf32>
    %11 = vector.extract_strided_slice %0 {offsets = [1, 0], sizes = [1, 128], strides = [1, 1]} : vector<4x128xf32> to vector<1x128xf32>
    %12 = vector.broadcast %10 : vector<32x1xf32> to vector<32x128xf32>
    %13 = vector.broadcast %11 : vector<1x128xf32> to vector<32x128xf32>
    %14 = arith.mulf %12, %13 : vector<32x128xf32>
    %15 = arith.addf %9, %14 : vector<32x128xf32>
    %16 = vector.extract_strided_slice %1 {offsets = [0, 2], sizes = [32, 1], strides = [1, 1]} : vector<32x4xf32> to vector<32x1xf32>
    %17 = vector.extract_strided_slice %0 {offsets = [2, 0], sizes = [1, 128], strides = [1, 1]} : vector<4x128xf32> to vector<1x128xf32>
    %18 = vector.broadcast %16 : vector<32x1xf32> to vector<32x128xf32>
    %19 = vector.broadcast %17 : vector<1x128xf32> to vector<32x128xf32>
    %20 = arith.mulf %18, %19 : vector<32x128xf32>
    %21 = arith.addf %15, %20 : vector<32x128xf32>
    %22 = vector.extract_strided_slice %1 {offsets = [0, 3], sizes = [32, 1], strides = [1, 1]} : vector<32x4xf32> to vector<32x1xf32>
    %23 = vector.extract_strided_slice %0 {offsets = [3, 0], sizes = [1, 128], strides = [1, 1]} : vector<4x128xf32> to vector<1x128xf32>
    %24 = vector.broadcast %22 : vector<32x1xf32> to vector<32x128xf32>
    %25 = vector.broadcast %23 : vector<1x128xf32> to vector<32x128xf32>
    %26 = arith.mulf %24, %25 : vector<32x128xf32>
    %27 = arith.addf %21, %26 : vector<32x128xf32>
    %cst = arith.constant 0.000000e+00 : f32
    %28 = vector.broadcast %cst : f32 to vector<32x128xf32>
    %29 = arith.maximumf %27, %28 : vector<32x128xf32>
    %c0_5 = arith.constant 0 : index
    %c0_6 = arith.constant 0 : index
    %30 = vector.load %arg4[%c0_5, %c0_6] : memref<8x32xf32, #tpu.memory_space<vmem>>, vector<8x32xf32>
    %cst_7 = arith.constant dense<0.000000e+00> : vector<8x128xf32>
    %31 = tpu.matmul %30, %29, %cst_7 {dimension_numbers = #tpu.dot_dimension_numbers<[1], [0], [0], [1], [0, 0, 1, 1], [], []>} : vector<8x32xf32>, vector<32x128xf32>, vector<8x128xf32> -> vector<8x128xf32>
    %c0_8 = arith.constant 0 : index
    %c0_9 = arith.constant 0 : index
    %32 = vector.load %arg5[%c0_8, %c0_9] : memref<8x1xf32, #tpu.memory_space<vmem>>, vector<8x1xf32>
    %33 = vector.broadcast %32 : vector<8x1xf32> to vector<8x128xf32>
    %34 = arith.addf %31, %33 : vector<8x128xf32>
    %cst_10 = arith.constant dense<0xFF800000> : vector<128xf32>
    %35 = vector.multi_reduction <maximumf>, %34, %cst_10 [0] : vector<8x128xf32> to vector<128xf32>
    %36 = vector.shape_cast %35 : vector<128xf32> to vector<1x128xf32>
    %37 = vector.broadcast %36 : vector<1x128xf32> to vector<8x128xf32>
    %38 = arith.subf %34, %37 : vector<8x128xf32>
    %39 = math.exp %38 : vector<8x128xf32>
    %cst_11 = arith.constant dense<0.000000e+00> : vector<128xf32>
    %40 = vector.multi_reduction <add>, %39, %cst_11 [0] : vector<8x128xf32> to vector<128xf32>
    %41 = vector.shape_cast %40 : vector<128xf32> to vector<1x128xf32>
    %cst_12 = arith.constant 1.000000e+00 : f32
    %42 = vector.broadcast %cst_12 : f32 to vector<1x128xf32>
    %43 = arith.divf %42, %41 : vector<1x128xf32>
    %44 = vector.broadcast %43 : vector<1x128xf32> to vector<8x128xf32>
    %45 = arith.mulf %39, %44 : vector<8x128xf32>
    %c0_13 = arith.constant 0 : index
    %c0_14 = arith.constant 0 : index
    %46 = vector.load %arg6[%c0_13, %c0_14] : memref<8x128xf32, #tpu.memory_space<vmem>>, vector<8x128xf32>
    tpu.vector_store %arg6[%c0_13, %c0_14], %45 {strides = array<i32>} : memref<8x128xf32, #tpu.memory_space<vmem>>, vector<8x128xf32>,
    return
  }
  func.func @transform_0(%arg0: i32) -> (i32, i32) {
    %c0_i32 = arith.constant 0 : i32
    %c0_i32_0 = arith.constant 0 : i32
    return %c0_i32, %arg0 : i32, i32
  }
  func.func @transform_1(%arg0: i32) -> (i32, i32) {
    %c0_i32 = arith.constant 0 : i32
    %c0_i32_0 = arith.constant 0 : i32
    %c0_i32_1 = arith.constant 0 : i32
    return %c0_i32, %c0_i32_0 : i32, i32
  }
  func.func @transform_2(%arg0: i32) -> (i32, i32) {
    %c0_i32 = arith.constant 0 : i32
    %c0_i32_0 = arith.constant 0 : i32
    %c0_i32_1 = arith.constant 0 : i32
    return %c0_i32, %c0_i32_0 : i32, i32
  }
  func.func @transform_3(%arg0: i32) -> (i32, i32) {
    %c0_i32 = arith.constant 0 : i32
    %c0_i32_0 = arith.constant 0 : i32
    %c0_i32_1 = arith.constant 0 : i32
    return %c0_i32, %c0_i32_0 : i32, i32
  }
  func.func @transform_4(%arg0: i32) -> (i32, i32) {
    %c0_i32 = arith.constant 0 : i32
    %c0_i32_0 = arith.constant 0 : i32
    %c0_i32_1 = arith.constant 0 : i32
    return %c0_i32, %c0_i32_0 : i32, i32
  }
  func.func @transform_5(%arg0: i32) -> (i32, i32) {
    %c0_i32 = arith.constant 0 : i32
    %c0_i32_0 = arith.constant 0 : i32
    return %c0_i32, %arg0 : i32, i32
  }
}

</mosaic_0001>

<llo_original>
// kernel: tpu_custom_call.1
$region0: #{tpu_custom_call.1}
  #allocation0 [shape = 'u32[]', space=smem, size = 0x4, offset = 0x4, fixed_abs, tag = 'smem constant byte address 0x4 - core index']
  #allocation1 [shape = 'u32[144,128]{1,0:T(1,128)}', space=vmem, size = 0x12000, scoped, tag = 'internal scratch']
  %s0 = inlined_call_operand.vmem [shape: f32[4,128], index: 0, kind: input, shape index: {}]
  %s1 = inlined_call_operand.vmem [shape: f32[32,4], index: 1, kind: input, shape index: {}]
  %s2 = inlined_call_operand.vmem [shape: f32[32,1], index: 2, kind: input, shape index: {}]
  %s3 = inlined_call_operand.vmem [shape: f32[8,32], index: 3, kind: input, shape index: {}]
  %s4 = inlined_call_operand.vmem [shape: f32[8,1], index: 4, kind: input, shape index: {}]
  %s5 = inlined_call_operand.hbm [shape: f32[8,128], index: 5, kind: output, shape index: {}]
  %s6 = sld [smem:[#allocation0]]
  $region30: #{tpu_custom_call.1} parent=0
    _
  %s8 = ssub.s32 1, %s6
  %s9 = scalar_select 0, %s8, %s6
  $region1: #{tpu_custom_call.1} parent=0
    #allocation2 [shape = 'u8[4096]{0}', space=vmem, size = 0x1000, scoped, tag = 'output window, operand 0, single buffered']
    #allocation3 [shape = 's32[1]{0}', space=sflag, size = 0x4, scoped, tag = 'scoped memory for tpu_custom_call.1']
    %10 = vsyncpa [#allocation3], 0
    // Predicated region
    $region2: #{tpu_custom_call.1} parent=1 // pred_check
      _
    $region3: #{tpu_custom_call.1} parent=1 // pred_check_branch
      %12 = sbr.rel (0) target = $region5
    $region4: #{tpu_custom_call.1} parent=1 // pred_region
      _
    $region5: #{tpu_custom_call.1} parent=1 // pred_fallthru
      _
    // Predicated region
    $region6: #{tpu_custom_call.1} parent=1 // pred_check
      _
    $region7: #{tpu_custom_call.1} parent=1 // pred_check_branch
      %14 = sbr.rel (0) target = $region9
    $region8: #{tpu_custom_call.1} parent=1 // pred_region
      _
    $region9: #{tpu_custom_call.1} parent=1 // pred_fallthru
      _
    // Predicated region
    $region10: #{tpu_custom_call.1} parent=1 // pred_check
      _
    $region11: #{tpu_custom_call.1} parent=1 // pred_check_branch
      %16 = sbr.rel (0) target = $region13
    $region12: #{tpu_custom_call.1} parent=1 // pred_region
      _
    $region13: #{tpu_custom_call.1} parent=1 // pred_fallthru
      _
    // Predicated region
    $region14: #{tpu_custom_call.1} parent=1 // pred_check
      _
    $region15: #{tpu_custom_call.1} parent=1 // pred_check_branch
      %18 = sbr.rel (0) target = $region17
    $region16: #{tpu_custom_call.1} parent=1 // pred_region
      _
    $region17: #{tpu_custom_call.1} parent=1 // pred_fallthru
      _
    // Predicated region
    $region18: #{tpu_custom_call.1} parent=1 // pred_check
      _
    $region19: #{tpu_custom_call.1} parent=1 // pred_check_branch
      %20 = sbr.rel (0) target = $region21
    $region20: #{tpu_custom_call.1} parent=1 // pred_region
      _
    $region21: #{tpu_custom_call.1} parent=1 // pred_fallthru
      _
    %v21 = vld [vmem:[%s0] sm:$0xf]
    %v22 = vld [vmem:[%s1] sm:$0xff]
    %v23 = vld [vmem:[%s1 + $0x8] sm:$0xff]
    %v24 = vld [vmem:[%s1 + $0x10] sm:$0xff]
    %v25 = vld [vmem:[%s1 + $0x18] sm:$0xff]
    %27 = vset.pattern.permute.xlu0 0
    %28 = vperm.xlu0 %27, %v22
    %v29 = vpop.permute.xlu0 %28
    %32 = vset.pattern.permute.xlu0 0
    %33 = vperm.xlu0 %32, %v23
    %v34 = vpop.permute.xlu0 %33
    %37 = vset.pattern.permute.xlu0 0
    %38 = vperm.xlu0 %37, %v24
    %v39 = vpop.permute.xlu0 %38
    %42 = vset.pattern.permute.xlu0 0
    %43 = vperm.xlu0 %42, %v25
    %v44 = vpop.permute.xlu0 %43
    %v46 = vlaneseq
    %v47 = vshrl.u32 %v46, 7
    %v48 = vsub.s32 0, %v47
    %v49 = vrot.slane %v21, %v48
    %v50 = vmul.f32 %v29, %v49
    %v51 = vmul.f32 %v34, %v49
    %v52 = vmul.f32 %v39, %v49
    %v53 = vmul.f32 %v44, %v49
    %v54 = vld [vmem:[%s2] sm:$0xff]
    %v55 = vld [vmem:[%s2 + $0x8] sm:$0xff]
    %v56 = vld [vmem:[%s2 + $0x10] sm:$0xff]
    %v57 = vld [vmem:[%s2 + $0x18] sm:$0xff]
    %59 = vset.pattern.permute.xlu0 0
    %60 = vperm.xlu0 %59, %v54
    %v61 = vpop.permute.xlu0 %60
    %64 = vset.pattern.permute.xlu0 0
    %65 = vperm.xlu0 %64, %v55
    %v66 = vpop.permute.xlu0 %65
    %69 = vset.pattern.permute.xlu0 0
    %70 = vperm.xlu0 %69, %v56
    %v71 = vpop.permute.xlu0 %70
    %74 = vset.pattern.permute.xlu0 0
    %75 = vperm.xlu0 %74, %v57
    %v76 = vpop.permute.xlu0 %75
    %v78 = vadd.f32 %v50, %v61
    %v79 = vadd.f32 %v51, %v66
    %v80 = vadd.f32 %v52, %v71
    %v81 = vadd.f32 %v53, %v76
    %82 = vset.pattern.permute.xlu0 1
    %83 = vperm.xlu0 %82, %v22
    %v84 = vpop.permute.xlu0 %83
    %86 = vset.pattern.permute.xlu0 1
    %87 = vperm.xlu0 %86, %v23
    %v88 = vpop.permute.xlu0 %87
    %90 = vset.pattern.permute.xlu0 1
    %91 = vperm.xlu0 %90, %v24
    %v92 = vpop.permute.xlu0 %91
    %94 = vset.pattern.permute.xlu0 1
    %95 = vperm.xlu0 %94, %v25
    %v96 = vpop.permute.xlu0 %95
    %v98 = vlaneseq
    %v99 = vshrl.u32 %v98, 7
    %v100 = vsub.s32 1, %v99
    %v101 = vrot.slane %v21, %v100
    %v102 = vmul.f32 %v84, %v101
    %v103 = vmul.f32 %v88, %v101
    %v104 = vmul.f32 %v92, %v101
    %v105 = vmul.f32 %v96, %v101
    %v106 = vadd.f32 %v78, %v102
    %v107 = vadd.f32 %v79, %v103
    %v108 = vadd.f32 %v80, %v104
    %v109 = vadd.f32 %v81, %v105
    %110 = vset.pattern.permute.xlu0 2
    %111 = vperm.xlu0 %110, %v22
    %v112 = vpop.permute.xlu0 %111
    %114 = vset.pattern.permute.xlu0 2
    %115 = vperm.xlu0 %114, %v23
    %v116 = vpop.permute.xlu0 %115
    %118 = vset.pattern.permute.xlu0 2
    %119 = vperm.xlu0 %118, %v24
    %v120 = vpop.permute.xlu0 %119
    %122 = vset.pattern.permute.xlu0 2
    %123 = vperm.xlu0 %122, %v25
    %v124 = vpop.permute.xlu0 %123
    %v126 = vlaneseq
    %v127 = vshrl.u32 %v126, 7
    %v128 = vsub.s32 2, %v127
    %v129 = vrot.slane %v21, %v128
    %v130 = vmul.f32 %v112, %v129
    %v131 = vmul.f32 %v116, %v129
    %v132 = vmul.f32 %v120, %v129
    %v133 = vmul.f32 %v124, %v129
    %v134 = vadd.f32 %v106, %v130
    %v135 = vadd.f32 %v107, %v131
    %v136 = vadd.f32 %v108, %v132
    %v137 = vadd.f32 %v109, %v133
    %138 = vset.pattern.permute.xlu0 3
    %139 = vperm.xlu0 %138, %v22
    %v140 = vpop.permute.xlu0 %139
    %142 = vset.pattern.permute.xlu0 3
    %143 = vperm.xlu0 %142, %v23
    %v144 = vpop.permute.xlu0 %143
    %146 = vset.pattern.permute.xlu0 3
    %147 = vperm.xlu0 %146, %v24
    %v148 = vpop.permute.xlu0 %147
    %150 = vset.pattern.permute.xlu0 3
    %151 = vperm.xlu0 %150, %v25
    %v152 = vpop.permute.xlu0 %151
    %v154 = vlaneseq
    %v155 = vshrl.u32 %v154, 7
    %v156 = vsub.s32 3, %v155
    %v157 = vrot.slane %v21, %v156
    %v158 = vmul.f32 %v140, %v157
    %v159 = vmul.f32 %v144, %v157
    %v160 = vmul.f32 %v148, %v157
    %v161 = vmul.f32 %v152, %v157
    %v162 = vadd.f32 %v134, %v158
    %v163 = vadd.f32 %v135, %v159
    %v164 = vadd.f32 %v136, %v160
    %v165 = vadd.f32 %v137, %v161
    %v166 = vmax.f32 %v162, 0.0
    %v167 = vmax.f32 %v163, 0.0
    %v168 = vmax.f32 %v164, 0.0
    %v169 = vmax.f32 %v165, 0.0
    %v170 = vld [vmem:[%s3] sm:$0xff]
    %v171 = vld [vmem:[%s4] sm:$0xff]
    %173 = vset.pattern.permute.xlu0 0
    %174 = vperm.xlu0 %173, %v171
    %v175 = vpop.permute.xlu0 %174
    %vm177 = vcmask 261120
    %v179 = vsel %vm177, %v170, 0
    %181 = vmatprep.subr.mxu0 0.0
    %182 = vmatpush1.msra.mxu0 %v166
    %183 = vmatprep.subr.mxu0 0.0
    %184 = vmatpush1.msra.mxu0 %v167
    %185 = vmatprep.subr.mxu0 0.0
    %186 = vmatpush1.msra.mxu0 %v168
    %187 = vmatprep.subr.mxu0 0.0
    %188 = vmatpush1.msra.mxu0 %v169
    %189 = vmatprep.subr.mxu0 0.0
    %190 = vmatpush1.msra.mxu0 0.0
    %191 = vmatprep.subr.mxu0 0.0
    %192 = vmatpush1.msra.mxu0 0.0
    %193 = vmatprep.subr.mxu0 0.0
    %194 = vmatpush1.msra.mxu0 0.0
    %195 = vmatprep.subr.mxu0 0.0
    %196 = vmatpush1.msra.mxu0 0.0
    %197 = vmatprep.subr.mxu0 0.0
    %198 = vmatpush1.msra.mxu0 0.0
    %199 = vmatprep.subr.mxu0 0.0
    %200 = vmatpush1.msra.mxu0 0.0
    %201 = vmatprep.subr.mxu0 0.0
    %202 = vmatpush1.msra.mxu0 0.0
    %203 = vmatprep.subr.mxu0 0.0
    %204 = vmatpush1.msra.mxu0 0.0
    %205 = vmatprep.subr.mxu0 0.0
    %206 = vmatpush1.msra.mxu0 0.0
    %207 = vmatprep.subr.mxu0 0.0
    %208 = vmatpush1.msra.mxu0 0.0
    %209 = vmatprep.subr.mxu0 0.0
    %210 = vmatpush1.msra.mxu0 0.0
    %211 = vmatprep.subr.mxu0 0.0
    %212 = vmatpush1.msra.mxu0 0.0
    %213 = vmatprep.subr.mxu0 0.0
    %214 = vmatpush1.msra.mxu0 0.0
    %215 = vmatprep.subr.mxu0 0.0
    %216 = vmatpush1.msra.mxu0 0.0
    %217 = vmatprep.subr.mxu0 0.0
    %218 = vmatpush1.msra.mxu0 0.0
    %219 = vmatprep.subr.mxu0 0.0
    %220 = vmatpush1.msra.mxu0 0.0
    %221 = vmatprep.subr.mxu0 0.0
    %222 = vmatpush1.msra.mxu0 0.0
    %223 = vmatprep.subr.mxu0 0.0
    %224 = vmatpush1.msra.mxu0 0.0
    %225 = vmatprep.subr.mxu0 0.0
    %226 = vmatpush1.msra.mxu0 0.0
    %227 = vmatprep.subr.mxu0 0.0
    %228 = vmatpush1.msra.mxu0 0.0
    %229 = vmatprep.subr.mxu0 0.0
    %230 = vmatpush1.msra.mxu0 0.0
    %231 = vmatprep.subr.mxu0 0.0
    %232 = vmatpush1.msra.mxu0 0.0
    %233 = vmatprep.subr.mxu0 0.0
    %234 = vmatpush1.msra.mxu0 0.0
    %235 = vmatprep.subr.mxu0 0.0
    %236 = vmatpush1.msra.mxu0 0.0
    %237 = vmatprep.subr.mxu0 0.0
    %238 = vmatpush1.msra.mxu0 0.0
    %239 = vmatprep.subr.mxu0 0.0
    %240 = vmatpush1.msra.mxu0 0.0
    %241 = vmatprep.subr.mxu0 0.0
    %242 = vmatpush1.msra.mxu0 0.0
    %243 = vmatprep.subr.mxu0 0.0
    %244 = vmatpush1.msra.mxu0 0.0
    %245 = vmatprep.mubr.f32.mxu0 0.0
    %246 = vmatmul.mubr.f32.gmra.mrb[0].mxu0 %v179
    %v247 = vpop.f32.mrb[0].mxu0
    %v248 = vadd.f32 %v175, %v247
    %v249 = vpop.f32.mrb[0].mxu0
    %250 = vdwg.mxu0
    %v251 = vrot.slane %v248, 4
    %v252 = vmax.f32 %v248, %v251
    %v253 = vrot.slane %v252, 2
    %v254 = vmax.f32 %v252, %v253
    %v255 = vrot.slane %v254, 1
    %v256 = vmax.f32 %v254, %v255
    %v257 = vsub.f32 %v248, %v256
    %v258 = vmul.f32 %v257, 1.442695
    %v259 = vpow.pop %v258
    %v260 = vrot.slane %v259, 4
    %v261 = vadd.f32 %v259, %v260
    %v262 = vrot.slane %v261, 2
    %v263 = vadd.f32 %v261, %v262
    %v264 = vrot.slane %v263, 1
    %v265 = vadd.f32 %v263, %v264
    %v266 = vrcp.pop %v265
    %v267 = vmul.f32 1.0, %v266
    %v268 = vmul.f32 %v259, %v267
    %269 = vst [vmem:[#allocation2] sm:$0xff] %v268
    // Predicated region
    $region22: #{tpu_custom_call.1} parent=1 // pred_check
      _
    $region23: #{tpu_custom_call.1} parent=1 // pred_check_branch
      %271 = sbr.rel (0) target = $region25
    $region24: #{tpu_custom_call.1} parent=1 // pred_region
      %s273 = ssub.s32 128, 128
      %274 = vsyncadd [#allocation3], %s273
      %s276 = sshll.u32 [#allocation2], 4
      %s277 = int_to_ptr.vmem [resolvable:$true] %s276
      %279 = dma.vmem_to_hbm [thread:$0]  %s277, 128, %s5, [#allocation3]
    $region25: #{tpu_custom_call.1} parent=1 // pred_fallthru
      _
    // Predicated region
    $region26: #{tpu_custom_call.1} parent=1 // pred_check
      _
    $region27: #{tpu_custom_call.1} parent=1 // pred_check_branch
      %281 = sbr.rel (0) target = $region29
    $region28: #{tpu_custom_call.1} parent=1 // pred_region
      %282 = dma.done [#allocation3], 128
    $region29: #{tpu_custom_call.1} parent=1 // pred_fallthru
      _
    %283 = vsyncpa [#allocation3], 1

</llo_original>
